<compile_context>
chip_gen: v5e
topology: v5e:2x2
jax: 0.10.0
libtpu: 0.0.40
codegen_flags: <defaults>
</compile_context>

<pallas_src>
import functools

import jax
import jax.numpy as jnp
from jax import lax
from jax.experimental import pallas as pl
from jax.experimental.pallas import tpu as pltpu


# dot_general contracting the LAST dims of both operands:
#   (M, C) x (N, C) -> (M, N)   i.e.  x @ w.T  without any transpose op
# (torch nn.Linear weights are stored (out, in)).
_CONTRACT_LAST = (((1,), (1,)), ((), ()))


def _mha_kernel(*refs, n_splits, scale, mask_kind, mxu_dtype):
    """One (batch, q_tile) step of the fused multi-head attention."""
    refs = list(refs)
    lens_ref = refs.pop(0) if mask_kind == "lens" else None      # SMEM (B,)
    q_ref, k_ref, v_ref, wq_ref, wk_ref, wv_ref, wo_ref = refs[:7]
    refs = refs[7:]
    mask_ref = refs.pop(0) if mask_kind == "dense" else None     # (Tq, Tk) i8
    (o_ref,) = refs

    f32 = jnp.float32
    mx = (lambda x: x) if mxu_dtype is None else (lambda x: x.astype(mxu_dtype))

    q = mx(q_ref[...])                    # (Tq, H)
    k = mx(k_ref[...])                    # (Tk, H)
    v = mx(v_ref[...])                    # (Tk, H)

    # Projections: torch weight layout (out, in) consumed directly (contract
    # on `in`); bf16 operands, f32 accumulation.
    qw = lax.dot_general(q, mx(wq_ref[...]), _CONTRACT_LAST,
                         preferred_element_type=f32)
    kw = lax.dot_general(k, mx(wk_ref[...]), _CONTRACT_LAST,
                         preferred_element_type=f32)
    vw = lax.dot_general(v, mx(wv_ref[...]), _CONTRACT_LAST,
                         preferred_element_type=f32)

    Tq, H = qw.shape
    Tk = kw.shape[0]
    dk = H // n_splits

    # Fold 1/sqrt(dk) into Q once, in f32, before the downcast for the score
    # matmul (Tq*H muls instead of n_splits*Tq*Tk; relative rounding unchanged).
    qw = qw * scale

    # Heads to a leading batch axis: single batched MXU matmuls per stage
    # instead of n_splits narrow dk-wide ones.
    qh = jnp.transpose(qw.reshape(Tq, n_splits, dk), (1, 0, 2))   # (h, Tq, dk)
    kh = jnp.transpose(kw.reshape(Tk, n_splits, dk), (1, 0, 2))   # (h, Tk, dk)
    vh = jnp.transpose(vw.reshape(Tk, n_splits, dk), (1, 0, 2))   # (h, Tk, dk)

    s = jnp.einsum("hqd,hkd->hqk", mx(qh), mx(kh),
                   preferred_element_type=f32)                    # (h, Tq, Tk)

    # Mask applied ONCE on the f32 scores (not per head / per loop iteration).
    if mask_kind == "dense":
        dead = mask_ref[...] != 0                                  # (Tq, Tk)
        s = jnp.where(dead[None, :, :], -jnp.inf, s)
    elif mask_kind == "lens":
        n_valid = lens_ref[pl.program_id(0)]                       # SMEM scalar
        kpos = lax.broadcasted_iota(jnp.int32, (Tq, Tk), 1)
        s = jnp.where((kpos >= n_valid)[None, :, :], -jnp.inf, s)

    # Softmax in f32 (VPU/EUP).  NOTE: a fully-masked row yields NaN, exactly
    # like the torch module (exp(-inf - -inf)).
    m = jnp.max(s, axis=-1, keepdims=True)
    p = jnp.exp(s - m)
    w = p * pl.reciprocal(jnp.sum(p, axis=-1, keepdims=True))      # exact recip

    ch = jnp.einsum("hqk,hkd->hqd", mx(w), mx(vh),
                    preferred_element_type=f32)                    # (h, Tq, dk)

    # Merge heads back to a lane-dense (Tq, H) slab and do ONE output
    # projection contracting the full H.
    c = jnp.transpose(ch, (1, 0, 2)).reshape(Tq, H)
    out = lax.dot_general(mx(c), mx(wo_ref[...]), _CONTRACT_LAST,
                          preferred_element_type=f32)
    o_ref[...] = out.astype(o_ref.dtype)


def _choose_q_tile(Tq, max_tile=512):
    """Largest sublane-aligned divisor of Tq that is <= max_tile."""
    if Tq <= max_tile:
        return Tq
    for t in range(max_tile, 7, -1):
        if Tq % t == 0 and t % 8 == 0:
            return t
    return Tq          # no aligned divisor: fall back to a single Tq block


def multi_head_forward(params, Q, K, V, mask=None, key_lengths=None, *,
                       n_splits, q_tile=None, mxu_dtype=jnp.bfloat16):
    """Fused MultiHead forward.

    mask:        optional (B, Tq, Tk) bool/int; True / nonzero = masked
                 (same semantics as the torch module).
    key_lengths: optional (B,) int; key positions >= length are masked
                 (scalar-prefetched; no dense mask tensor is materialized).
                 Mutually exclusive with `mask`.
    """
    assert mask is None or key_lengths is None
    Wq, Wk, Wv, Wo = params["Wq"], params["Wk"], params["Wv"], params["Wo"]
    B, Tq, H = Q.shape
    Tk = K.shape[1]
    assert H % n_splits == 0
    dk = H // n_splits
    scale = 1.0 / (dk ** 0.5)

    q_tile = _choose_q_tile(Tq) if q_tile is None else q_tile
    assert Tq % q_tile == 0
    nq = Tq // q_tile

    mask_kind = "none"
    if key_lengths is not None:
        mask_kind = "lens"
    elif mask is not None:
        mask_kind = "dense"

    kernel = functools.partial(_mha_kernel, n_splits=n_splits, scale=scale,
                               mask_kind=mask_kind, mxu_dtype=mxu_dtype)

    # Leading batch dim squeezed out of the kernel refs. index_maps take *_ so
    # the same lambdas work with and without the scalar-prefetch ref appended.
    q_spec = pl.BlockSpec((pl.Squeezed(), q_tile, H),
                          lambda b, qi, *_: (b, qi, 0))
    kv_spec = pl.BlockSpec((pl.Squeezed(), Tk, H),
                           lambda b, qi, *_: (b, 0, 0))
    # Constant block index + single buffer: weights fetched once, never
    # double-buffered.
    w_spec = pl.BlockSpec((H, H), lambda b, qi, *_: (0, 0),
                          pipeline_mode=pl.Buffered(1))
    out_spec = pl.BlockSpec((pl.Squeezed(), q_tile, H),
                            lambda b, qi, *_: (b, qi, 0))

    in_specs = [q_spec, kv_spec, kv_spec, w_spec, w_spec, w_spec, w_spec]
    args = [Q, K, V, Wq, Wk, Wv, Wo]
    prefetch_args = []
    num_scalar_prefetch = 0
    mask_bytes = 0
    if mask_kind == "lens":
        num_scalar_prefetch = 1
        prefetch_args = [key_lengths.astype(jnp.int32)]
        mask_bytes = 4 * B
    elif mask_kind == "dense":
        in_specs.append(pl.BlockSpec((pl.Squeezed(), q_tile, Tk),
                                     lambda b, qi, *_: (b, qi, 0)))
        args.append((mask != 0).astype(jnp.int8))   # 1 B/elem, not an f32 bias
        mask_bytes = B * Tq * Tk

    itemsize = jnp.dtype(Q.dtype).itemsize
    # VMEM budget: double-buffered activation blocks + single-buffered weights
    # + mask block, with generous headroom for in-kernel intermediates.
    block_bytes = (2 * (2 * q_tile * H + 2 * Tk * H) * itemsize
                   + 4 * H * H * itemsize
                   + (2 * q_tile * Tk if mask_kind == "dense" else 0))
    vmem_limit = int(min(64 * 1024 * 1024,
                         max(32 * 1024 * 1024, 4 * block_bytes)))

    flops = 2 * B * (Tq * H * H              # Q projection
                     + 2 * nq * Tk * H * H   # K/V projections (per q tile)
                     + 2 * Tq * Tk * H       # QK^T and PV
                     + Tq * H * H)           # output projection
    transcendentals = B * n_splits * Tq * Tk
    bytes_accessed = (itemsize * (2 * B * Tq * H + 2 * nq * B * Tk * H
                                  + 4 * H * H) + mask_bytes)

    return pl.pallas_call(
        kernel,
        out_shape=jax.ShapeDtypeStruct((B, Tq, H), Q.dtype),
        grid_spec=pltpu.PrefetchScalarGridSpec(
            num_scalar_prefetch=num_scalar_prefetch,
            grid=(B, nq),
            in_specs=in_specs,
            out_specs=out_spec,
        ),
        compiler_params=pltpu.CompilerParams(
            dimension_semantics=("parallel", "parallel"),
            vmem_limit_bytes=vmem_limit),
        cost_estimate=pl.CostEstimate(flops=int(flops),
                                      transcendentals=int(transcendentals),
                                      bytes_accessed=int(bytes_accessed)),
    )(*prefetch_args, *args)


# ----------------------------------------------------------------------------
# Pure-JAX reference (matches the PyTorch module semantics exactly, f32)
# ----------------------------------------------------------------------------
def multi_head_reference(params, Q, K, V, mask=None, *, n_splits):
    Wq, Wk, Wv, Wo = params["Wq"], params["Wk"], params["Wv"], params["Wo"]
    B, Tq, H = Q.shape
    dk = H // n_splits

    QW, KW, VW = Q @ Wq.T, K @ Wk.T, V @ Wv.T

    def heads(x):
        b, t, _ = x.shape
        return jnp.transpose(x.reshape(b, t, n_splits, dk), (0, 2, 1, 3))

    Qh, Kh, Vh = heads(QW), heads(KW), heads(VW)             # (B, h, T, dk)
    s = jnp.einsum("bhqd,bhkd->bhqk", Qh, Kh)
    if mask is not None:
        s = jnp.where(mask[:, None, :, :], -jnp.inf, s)
    w = jax.nn.softmax(s / (dk ** 0.5), axis=-1)
    Ch = jnp.einsum("bhqk,bhkd->bhqd", w, Vh)
    C = jnp.transpose(Ch, (0, 2, 1, 3)).reshape(B, Tq, H)
    return C @ Wo.T


if __name__ == "__main__":
    hidden_size = 32
    n_splits = 4
    B, Tq, Tk = 2, 8, 8

    key = jax.random.PRNGKey(0)
    k1, k2, k3, k4, k5, k6, k7 = jax.random.split(key, 7)

    wscale = 1.0 / (hidden_size ** 0.5)
    params = {
        "Wq": jax.random.uniform(k1, (hidden_size, hidden_size), jnp.float32,
                                 -wscale, wscale),
        "Wk": jax.random.uniform(k2, (hidden_size, hidden_size), jnp.float32,
                                 -wscale, wscale),
        "Wv": jax.random.uniform(k3, (hidden_size, hidden_size), jnp.float32,
                                 -wscale, wscale),
        "Wo": jax.random.uniform(k4, (hidden_size, hidden_size), jnp.float32,
                                 -wscale, wscale),
    }

    Q = jax.random.normal(k5, (B, Tq, hidden_size), jnp.float32)
    K = jax.random.normal(k6, (B, Tk, hidden_size), jnp.float32)
    V = jax.random.normal(k7, (B, Tk, hidden_size), jnp.float32)

    # Key-padding: batch 0 fully valid, batch 1 masks the last 3 keys
    # (no fully-masked query rows -> no NaNs, matching real padded batches).
    valid_len = jnp.array([Tk, Tk - 3], dtype=jnp.int32)
    mask = jnp.broadcast_to(
        jnp.arange(Tk)[None, None, :] >= valid_len[:, None, None], (B, Tq, Tk))

    # bf16 MXU operands (f32 accumulation) trade a small relative rounding
    # error for MXU throughput; a structural error would be O(1).
    tol = dict(atol=2e-2, rtol=2e-2)

    ref = multi_head_reference(params, Q, K, V, mask=None, n_splits=n_splits)
    ref_m = multi_head_reference(params, Q, K, V, mask=mask, n_splits=n_splits)

    # 1) maskless path (no mask DMA, no in-kernel select).
    out = jax.block_until_ready(
        multi_head_forward(params, Q, K, V, n_splits=n_splits))
    assert out.shape == (B, Tq, hidden_size)
    assert jnp.allclose(out, ref, **tol), "maskless mismatch vs reference"

    # 2) key-padding path: lengths scalar-prefetched into SMEM, -inf mask built
    #    in-kernel from an iota (no (B,Tq,Tk) tensor ever touches HBM).
    out_l = jax.block_until_ready(
        multi_head_forward(params, Q, K, V, key_lengths=valid_len,
                           n_splits=n_splits))
    assert jnp.allclose(out_l, ref_m, **tol), "key-length mask mismatch"

    # 3) arbitrary dense-mask path (shipped as int8, expanded in-kernel).
    out_m = jax.block_until_ready(
        multi_head_forward(params, Q, K, V, mask=mask, n_splits=n_splits))
    assert jnp.allclose(out_m, ref_m, **tol), "dense mask mismatch"

    print("KERNEL_OK")
</pallas_src>

<mosaic_0001>
module attributes {stable_mosaic.version = 11 : i64} {
  func.func @_mha_kernel(%arg0: i32, %arg1: i32, %arg2: memref<1x8x32xf32, #tpu.memory_space<vmem>>, %arg3: memref<1x8x32xf32, #tpu.memory_space<vmem>>, %arg4: memref<1x8x32xf32, #tpu.memory_space<vmem>>, %arg5: memref<32x32xf32, #tpu.memory_space<vmem>>, %arg6: memref<32x32xf32, #tpu.memory_space<vmem>>, %arg7: memref<32x32xf32, #tpu.memory_space<vmem>>, %arg8: memref<32x32xf32, #tpu.memory_space<vmem>>, %arg9: memref<1x8x32xf32, #tpu.memory_space<vmem>>) attributes {dimension_semantics = [#tpu.dimension_semantics<parallel>, #tpu.dimension_semantics<parallel>], iteration_bounds = array<i64: 2, 1>, scalar_prefetch = 0 : i64, scratch_operands = 0 : i64, tpu.core_type = #tpu.core_type<tc>, window_params = [{transform_indices = @transform_0, window_bounds = array<i64: 1, 8, 32>}, {transform_indices = @transform_1, window_bounds = array<i64: 1, 8, 32>}, {transform_indices = @transform_2, window_bounds = array<i64: 1, 8, 32>}, {pipeline_mode = #tpu.pipeline_mode<synchronous>, transform_indices = @transform_3, window_bounds = array<i64: 32, 32>}, {pipeline_mode = #tpu.pipeline_mode<synchronous>, transform_indices = @transform_4, window_bounds = array<i64: 32, 32>}, {pipeline_mode = #tpu.pipeline_mode<synchronous>, transform_indices = @transform_5, window_bounds = array<i64: 32, 32>}, {pipeline_mode = #tpu.pipeline_mode<synchronous>, transform_indices = @transform_6, window_bounds = array<i64: 32, 32>}, {transform_indices = @transform_7, window_bounds = array<i64: 1, 8, 32>}]} {
    %c0 = arith.constant 0 : index
    %c0_0 = arith.constant 0 : index
    %c0_1 = arith.constant 0 : index
    %0 = vector.load %arg2[%c0, %c0_0, %c0_1] : memref<1x8x32xf32, #tpu.memory_space<vmem>>, vector<1x8x32xf32>
    %1 = vector.shape_cast %0 : vector<1x8x32xf32> to vector<8x32xf32>
    %2 = arith.truncf %1 : vector<8x32xf32> to vector<8x32xbf16>
    %c0_2 = arith.constant 0 : index
    %c0_3 = arith.constant 0 : index
    %c0_4 = arith.constant 0 : index
    %3 = vector.load %arg3[%c0_2, %c0_3, %c0_4] : memref<1x8x32xf32, #tpu.memory_space<vmem>>, vector<1x8x32xf32>
    %4 = vector.shape_cast %3 : vector<1x8x32xf32> to vector<8x32xf32>
    %5 = arith.truncf %4 : vector<8x32xf32> to vector<8x32xbf16>
    %c0_5 = arith.constant 0 : index
    %c0_6 = arith.constant 0 : index
    %c0_7 = arith.constant 0 : index
    %6 = vector.load %arg4[%c0_5, %c0_6, %c0_7] : memref<1x8x32xf32, #tpu.memory_space<vmem>>, vector<1x8x32xf32>
    %7 = vector.shape_cast %6 : vector<1x8x32xf32> to vector<8x32xf32>
    %8 = arith.truncf %7 : vector<8x32xf32> to vector<8x32xbf16>
    %c0_8 = arith.constant 0 : index
    %c0_9 = arith.constant 0 : index
    %9 = vector.load %arg5[%c0_8, %c0_9] : memref<32x32xf32, #tpu.memory_space<vmem>>, vector<32x32xf32>
    %10 = arith.truncf %9 : vector<32x32xf32> to vector<32x32xbf16>
    %cst = arith.constant dense<0.000000e+00> : vector<8x32xf32>
    %11 = tpu.matmul %2, %10, %cst {dimension_numbers = #tpu.dot_dimension_numbers<[1], [1], [0], [0], [0, 0, 1, 0], [], []>} : vector<8x32xbf16>, vector<32x32xbf16>, vector<8x32xf32> -> vector<8x32xf32>
    %c0_10 = arith.constant 0 : index
    %c0_11 = arith.constant 0 : index
    %12 = vector.load %arg6[%c0_10, %c0_11] : memref<32x32xf32, #tpu.memory_space<vmem>>, vector<32x32xf32>
    %13 = arith.truncf %12 : vector<32x32xf32> to vector<32x32xbf16>
    %cst_12 = arith.constant dense<0.000000e+00> : vector<8x32xf32>
    %14 = tpu.matmul %5, %13, %cst_12 {dimension_numbers = #tpu.dot_dimension_numbers<[1], [1], [0], [0], [0, 0, 1, 0], [], []>} : vector<8x32xbf16>, vector<32x32xbf16>, vector<8x32xf32> -> vector<8x32xf32>
    %c0_13 = arith.constant 0 : index
    %c0_14 = arith.constant 0 : index
    %15 = vector.load %arg7[%c0_13, %c0_14] : memref<32x32xf32, #tpu.memory_space<vmem>>, vector<32x32xf32>
    %16 = arith.truncf %15 : vector<32x32xf32> to vector<32x32xbf16>
    %cst_15 = arith.constant dense<0.000000e+00> : vector<8x32xf32>
    %17 = tpu.matmul %8, %16, %cst_15 {dimension_numbers = #tpu.dot_dimension_numbers<[1], [1], [0], [0], [0, 0, 1, 0], [], []>} : vector<8x32xbf16>, vector<32x32xbf16>, vector<8x32xf32> -> vector<8x32xf32>
    %cst_16 = arith.constant 0.353553385 : f32
    %18 = vector.broadcast %cst_16 : f32 to vector<8x32xf32>
    %19 = arith.mulf %11, %18 : vector<8x32xf32>
    %20 = vector.shape_cast %19 : vector<8x32xf32> to vector<8x4x8xf32>
    %21 = tpu.transpose %20, [1, 0, 2] : vector<8x4x8xf32> -> vector<4x8x8xf32>
    %22 = vector.shape_cast %14 : vector<8x32xf32> to vector<8x4x8xf32>
    %23 = tpu.transpose %22, [1, 0, 2] : vector<8x4x8xf32> -> vector<4x8x8xf32>
    %24 = vector.shape_cast %17 : vector<8x32xf32> to vector<8x4x8xf32>
    %25 = tpu.transpose %24, [1, 0, 2] : vector<8x4x8xf32> -> vector<4x8x8xf32>
    %26 = arith.truncf %21 : vector<4x8x8xf32> to vector<4x8x8xbf16>
    %27 = arith.truncf %23 : vector<4x8x8xf32> to vector<4x8x8xbf16>
    "tpu.trace_start"() <{level = 10 : i32, message = "hqd,hkd->hqk"}> : () -> ()
    %cst_17 = arith.constant dense<0.000000e+00> : vector<4x8x8xf32>
    %28 = tpu.matmul %26, %27, %cst_17 {dimension_numbers = #tpu.dot_dimension_numbers<[2], [2], [1], [1], [0, 0, 0, 1, 1, 1], [0], [0]>} : vector<4x8x8xbf16>, vector<4x8x8xbf16>, vector<4x8x8xf32> -> vector<4x8x8xf32>
    "tpu.trace_stop"() : () -> ()
    %cst_18 = arith.constant dense<0xFF800000> : vector<4x8xf32>
    %29 = vector.multi_reduction <maximumf>, %28, %cst_18 [2] : vector<4x8x8xf32> to vector<4x8xf32>
    %30 = vector.shape_cast %29 : vector<4x8xf32> to vector<4x8x1xf32>
    %31 = vector.broadcast %30 : vector<4x8x1xf32> to vector<4x8x8xf32>
    %32 = arith.subf %28, %31 : vector<4x8x8xf32>
    %33 = math.exp %32 : vector<4x8x8xf32>
    %cst_19 = arith.constant dense<0.000000e+00> : vector<4x8xf32>
    %34 = vector.multi_reduction <add>, %33, %cst_19 [2] : vector<4x8x8xf32> to vector<4x8xf32>
    %35 = vector.shape_cast %34 : vector<4x8xf32> to vector<4x8x1xf32>
    %36 = tpu.reciprocal %35 : vector<4x8x1xf32> -> vector<4x8x1xf32>
    %37 = vector.broadcast %36 : vector<4x8x1xf32> to vector<4x8x8xf32>
    %38 = arith.mulf %33, %37 : vector<4x8x8xf32>
    %39 = arith.truncf %38 : vector<4x8x8xf32> to vector<4x8x8xbf16>
    %40 = arith.truncf %25 : vector<4x8x8xf32> to vector<4x8x8xbf16>
    "tpu.trace_start"() <{level = 10 : i32, message = "hqk,hkd->hqd"}> : () -> ()
    %cst_20 = arith.constant dense<0.000000e+00> : vector<4x8x8xf32>
    %41 = tpu.matmul %39, %40, %cst_20 {dimension_numbers = #tpu.dot_dimension_numbers<[2], [1], [1], [2], [0, 0, 0, 1, 1, 2], [0], [0]>} : vector<4x8x8xbf16>, vector<4x8x8xbf16>, vector<4x8x8xf32> -> vector<4x8x8xf32>
    "tpu.trace_stop"() : () -> ()
    %42 = tpu.transpose %41, [1, 0, 2] : vector<4x8x8xf32> -> vector<8x4x8xf32>
    %43 = vector.shape_cast %42 : vector<8x4x8xf32> to vector<8x32xf32>
    %44 = arith.truncf %43 : vector<8x32xf32> to vector<8x32xbf16>
    %c0_21 = arith.constant 0 : index
    %c0_22 = arith.constant 0 : index
    %45 = vector.load %arg8[%c0_21, %c0_22] : memref<32x32xf32, #tpu.memory_space<vmem>>, vector<32x32xf32>
    %46 = arith.truncf %45 : vector<32x32xf32> to vector<32x32xbf16>
    %cst_23 = arith.constant dense<0.000000e+00> : vector<8x32xf32>
    %47 = tpu.matmul %44, %46, %cst_23 {dimension_numbers = #tpu.dot_dimension_numbers<[1], [1], [0], [0], [0, 0, 1, 0], [], []>} : vector<8x32xbf16>, vector<32x32xbf16>, vector<8x32xf32> -> vector<8x32xf32>
    %c0_24 = arith.constant 0 : index
    %c0_25 = arith.constant 0 : index
    %c0_26 = arith.constant 0 : index
    %48 = vector.load %arg9[%c0_24, %c0_25, %c0_26] : memref<1x8x32xf32, #tpu.memory_space<vmem>>, vector<1x8x32xf32>
    %49 = vector.shape_cast %48 : vector<1x8x32xf32> to vector<8x32xf32>
    %50 = vector.shape_cast %47 : vector<8x32xf32> to vector<1x8x32xf32>
    tpu.vector_store %arg9[%c0_24, %c0_25, %c0_26], %50 {strides = array<i32>} : memref<1x8x32xf32, #tpu.memory_space<vmem>>, vector<1x8x32xf32>,
    return
  }
  func.func @transform_0(%arg0: i32, %arg1: i32) -> (i32, i32, i32) {
    %c0_i32 = arith.constant 0 : i32
    %c0_i32_0 = arith.constant 0 : i32
    return %arg0, %arg1, %c0_i32 : i32, i32, i32
  }
  func.func @transform_1(%arg0: i32, %arg1: i32) -> (i32, i32, i32) {
    %c0_i32 = arith.constant 0 : i32
    %c0_i32_0 = arith.constant 0 : i32
    %c0_i32_1 = arith.constant 0 : i32
    return %arg0, %c0_i32, %c0_i32_0 : i32, i32, i32
  }
  func.func @transform_2(%arg0: i32, %arg1: i32) -> (i32, i32, i32) {
    %c0_i32 = arith.constant 0 : i32
    %c0_i32_0 = arith.constant 0 : i32
    %c0_i32_1 = arith.constant 0 : i32
    return %arg0, %c0_i32, %c0_i32_0 : i32, i32, i32
  }
  func.func @transform_3(%arg0: i32, %arg1: i32) -> (i32, i32) {
    %c0_i32 = arith.constant 0 : i32
    %c0_i32_0 = arith.constant 0 : i32
    %c0_i32_1 = arith.constant 0 : i32
    return %c0_i32, %c0_i32_0 : i32, i32
  }
  func.func @transform_4(%arg0: i32, %arg1: i32) -> (i32, i32) {
    %c0_i32 = arith.constant 0 : i32
    %c0_i32_0 = arith.constant 0 : i32
    %c0_i32_1 = arith.constant 0 : i32
    return %c0_i32, %c0_i32_0 : i32, i32
  }
  func.func @transform_5(%arg0: i32, %arg1: i32) -> (i32, i32) {
    %c0_i32 = arith.constant 0 : i32
    %c0_i32_0 = arith.constant 0 : i32
    %c0_i32_1 = arith.constant 0 : i32
    return %c0_i32, %c0_i32_0 : i32, i32
  }
  func.func @transform_6(%arg0: i32, %arg1: i32) -> (i32, i32) {
    %c0_i32 = arith.constant 0 : i32
    %c0_i32_0 = arith.constant 0 : i32
    %c0_i32_1 = arith.constant 0 : i32
    return %c0_i32, %c0_i32_0 : i32, i32
  }
  func.func @transform_7(%arg0: i32, %arg1: i32) -> (i32, i32, i32) {
    %c0_i32 = arith.constant 0 : i32
    %c0_i32_0 = arith.constant 0 : i32
    return %arg0, %arg1, %c0_i32 : i32, i32, i32
  }
}

</mosaic_0001>

<llo_original>
// kernel: tpu_custom_call.1
$region0: #{tpu_custom_call.1}
  #allocation0 [shape = 'u32[]', space=smem, size = 0x4, offset = 0x4, fixed_abs, tag = 'smem constant byte address 0x4 - core index']
  #allocation1 [shape = 'u32[72,128]{1,0:T(1,128)}', space=vmem, size = 0x9000, scoped, tag = 'internal scratch']
  %s0 = inlined_call_operand.hbm [shape: f32[2,8,32], index: 0, kind: input, shape index: {}]
  %s1 = inlined_call_operand.hbm [shape: f32[2,8,32], index: 1, kind: input, shape index: {}]
  %s2 = inlined_call_operand.hbm [shape: f32[2,8,32], index: 2, kind: input, shape index: {}]
  %s3 = inlined_call_operand.hbm [shape: f32[32,32], index: 3, kind: input, shape index: {}]
  %s4 = inlined_call_operand.hbm [shape: f32[32,32], index: 4, kind: input, shape index: {}]
  %s5 = inlined_call_operand.hbm [shape: f32[32,32], index: 5, kind: input, shape index: {}]
  %s6 = inlined_call_operand.hbm [shape: f32[32,32], index: 6, kind: input, shape index: {}]
  %s7 = inlined_call_operand.hbm [shape: f32[2,8,32], index: 7, kind: output, shape index: {}]
  %s8 = sld [smem:[#allocation0]]
  $region89: #{tpu_custom_call.1} parent=0
    _
  %s10 = ssub.s32 1, %s8
  %s11 = scalar_select 0, %s10, %s8
  $region1: #{tpu_custom_call.1} parent=0
    #allocation2 [shape = 'u8[8192]{0}', space=vmem, size = 0x2000, scoped, tag = 'input window, operand 0']
    #allocation3 [shape = 's32[2]{0}', space=sflag, size = 0x8, scoped, tag = 'scoped memory for tpu_custom_call.1']
    #allocation4 [shape = 's32[2]{0}', space=sflag, size = 0x8, scoped, tag = 'scoped memory for tpu_custom_call.1']
    #allocation5 [shape = 'u8[8192]{0}', space=vmem, size = 0x2000, scoped, tag = 'input window, operand 1']
    #allocation6 [shape = 's32[2]{0}', space=sflag, size = 0x8, scoped, tag = 'scoped memory for tpu_custom_call.1']
    #allocation7 [shape = 'u8[8192]{0}', space=vmem, size = 0x2000, scoped, tag = 'input window, operand 2']
    #allocation8 [shape = 'u8[16384]{0}', space=vmem, size = 0x4000, scoped, tag = 'input window, operand 3, single buffered']
    #allocation9 [shape = 's32[1]{0}', space=sflag, size = 0x4, scoped, tag = 'scoped memory for tpu_custom_call.1']
    #allocation10 [shape = 'u8[16384]{0}', space=vmem, size = 0x4000, scoped, tag = 'input window, operand 4, single buffered']
    #allocation11 [shape = 'u8[16384]{0}', space=vmem, size = 0x4000, scoped, tag = 'input window, operand 5, single buffered']
    #allocation12 [shape = 's32[1]{0}', space=sflag, size = 0x4, scoped, tag = 'scoped memory for tpu_custom_call.1']
    #allocation13 [shape = 'u8[16384]{0}', space=vmem, size = 0x4000, scoped, tag = 'input window, operand 6, single buffered']
    #allocation14 [shape = 'u8[8192]{0}', space=vmem, size = 0x2000, scoped, tag = 'output window, operand 0']
    %12 = vsyncpa [#allocation3], 0
    %s13 = scalar_lea.sflag [#allocation3], 1
    %14 = vsyncpa %s13, 0
    %15 = vsyncpa [#allocation6], 0
    %s16 = scalar_lea.sflag [#allocation6], 1
    %17 = vsyncpa %s16, 0
    %18 = vsyncpa [#allocation9], 0
    %19 = vsyncpa [#allocation12], 0
    %20 = vsyncpa [#allocation4], 0
    %s21 = scalar_lea.sflag [#allocation4], 1
    %22 = vsyncpa %s21, 0
    loop: start=0, step=1, limit=4
    $region2: #{tpu_custom_call.1} parent=1 // loop_pre_header
      _
    $region3: #{tpu_custom_call.1} parent=1 // loop_header
      %s24 = sphi 0, %s28
      %p25 = scmp.ge.s32.totalorder %s24, 4
      %s31 = sphi 0, %s43
      %s32 = sphi 0, %s39
      %s33 = sphi 0, %s31
      %s34 = sphi 0, %s32
      %s35 = sphi 0, %s33
      %s36 = sphi 0, %s34
      %s48 = sphi 0, %s50
      %s51 = sphi 0, %s48
      %s52 = sphi 0, %s51
      %s68 = sphi 0, %s52
      %s74 = sphi 0, %s76
      %s77 = sphi 0, %s74
      %s78 = sphi 0, %s77
      %s94 = sphi 0, %s78
      %s100 = sphi 0, %s102
      %s103 = sphi 0, %s100
      %s104 = sphi 0, %s103
      %s120 = sphi 0, %s104
      %s124 = sphi 0, %s124
      %s126 = sphi 0, %s124
      %s127 = sphi 0, %s126
      %s141 = sphi 0, %s127
      %s145 = sphi 0, %s145
      %s147 = sphi 0, %s145
      %s148 = sphi 0, %s147
      %s162 = sphi 0, %s148
      %s166 = sphi 0, %s166
      %s168 = sphi 0, %s166
      %s169 = sphi 0, %s168
      %s183 = sphi 0, %s169
      %s187 = sphi 0, %s187
      %s189 = sphi 0, %s187
      %s190 = sphi 0, %s189
      %s204 = sphi 0, %s190
      %s212 = sphi 0, %s214
      %s215 = sphi 0, %s212
      %s216 = sphi 0, %s215
      %s232 = sphi 0, %s216
    $region4: #{tpu_custom_call.1} parent=1 // loop_header_branch
      %27 = sbr.rel (%p25) target = $region8
    $region5: #{tpu_custom_call.1} parent=1 // loop_body
      %s29 = ssub.s32 %s24, 1
      %s30 = ssub.s32 %s24, 2
      %s37 = sadd.s32 1, %s32
      %p38 = scmp.ge.s32.totalorder %s37, 1
      %s39 = scalar_select %p38, 0, %s37
      %s40 = sadd.s32 1, %s31
      %s41 = scalar_select %p38, %s40, %s31
      %p42 = scmp.ge.s32.totalorder %s41, 2
      %s43 = scalar_select %p42, 0, %s41
      %s44 = ssub.s32 %s31, %s43
      %s45 = ssub.s32 %s32, %s39
      %s46 = sor.u32 %s44, %s45
      %p47 = scmp.eq.s32.totalorder %s46, 0
      %s49 = sadd.s32 %s48, 1
      %s50 = scalar_select %p47, %s48, %s49
      %p53 = pneg %p47
      %p54 = scmp.eq.s32.totalorder %s24, 1
      %p55 = por %p53, %p54
      %p56 = scmp.ne.s32.totalorder %s48, %s51
      %p57 = scmp.eq.s32.totalorder %s24, 0
      %p58 = por %p56, %p57
      %p59 = scmp.ne.s32.totalorder %s48, %s51
      %p60 = scmp.eq.s32.totalorder %s29, 1
      %p61 = por %p59, %p60
      %p62 = scmp.ne.s32.totalorder %s51, %s52
      %p63 = scmp.eq.s32.totalorder %s29, 0
      %p64 = por %p62, %p63
      %p65 = scmp.ne.s32.totalorder %s51, %s52
      %p66 = scmp.eq.s32.totalorder %s30, 1
      %p67 = por %p65, %p66
      %p69 = scmp.ne.s32.totalorder %s52, %s68
      %p70 = scmp.eq.s32.totalorder %s30, 0
      %p71 = por %p69, %p70
      %s72 = ssub.s32 %s31, %s43
      %p73 = scmp.eq.s32.totalorder %s72, 0
      %s75 = sadd.s32 %s74, 1
      %s76 = scalar_select %p73, %s74, %s75
      %p79 = pneg %p73
      %p80 = scmp.eq.s32.totalorder %s24, 1
      %p81 = por %p79, %p80
      %p82 = scmp.ne.s32.totalorder %s74, %s77
      %p83 = scmp.eq.s32.totalorder %s24, 0
      %p84 = por %p82, %p83
      %p85 = scmp.ne.s32.totalorder %s74, %s77
      %p86 = scmp.eq.s32.totalorder %s29, 1
      %p87 = por %p85, %p86
      %p88 = scmp.ne.s32.totalorder %s77, %s78
      %p89 = scmp.eq.s32.totalorder %s29, 0
      %p90 = por %p88, %p89
      %p91 = scmp.ne.s32.totalorder %s77, %s78
      %p92 = scmp.eq.s32.totalorder %s30, 1
      %p93 = por %p91, %p92
      %p95 = scmp.ne.s32.totalorder %s78, %s94
      %p96 = scmp.eq.s32.totalorder %s30, 0
      %p97 = por %p95, %p96
      %s98 = ssub.s32 %s31, %s43
      %p99 = scmp.eq.s32.totalorder %s98, 0
      %s101 = sadd.s32 %s100, 1
      %s102 = scalar_select %p99, %s100, %s101
      %p105 = pneg %p99
      %p106 = scmp.eq.s32.totalorder %s24, 1
      %p107 = por %p105, %p106
      %p108 = scmp.ne.s32.totalorder %s100, %s103
      %p109 = scmp.eq.s32.totalorder %s24, 0
      %p110 = por %p108, %p109
      %p111 = scmp.ne.s32.totalorder %s100, %s103
      %p112 = scmp.eq.s32.totalorder %s29, 1
      %p113 = por %p111, %p112
      %p114 = scmp.ne.s32.totalorder %s103, %s104
      %p115 = scmp.eq.s32.totalorder %s29, 0
      %p116 = por %p114, %p115
      %p117 = scmp.ne.s32.totalorder %s103, %s104
      %p118 = scmp.eq.s32.totalorder %s30, 1
      %p119 = por %p117, %p118
      %p121 = scmp.ne.s32.totalorder %s104, %s120
      %p122 = scmp.eq.s32.totalorder %s30, 0
      %p123 = por %p121, %p122
      %s125 = sadd.s32 %s124, 1
      %p128 = scmp.eq.s32.totalorder %s24, 1
      %p129 = scmp.ne.s32.totalorder %s124, %s126
      %p130 = scmp.eq.s32.totalorder %s24, 0
      %p131 = por %p129, %p130
      %p132 = scmp.ne.s32.totalorder %s124, %s126
      %p133 = scmp.eq.s32.totalorder %s29, 1
      %p134 = por %p132, %p133
      %p135 = scmp.ne.s32.totalorder %s126, %s127
      %p136 = scmp.eq.s32.totalorder %s29, 0
      %p137 = por %p135, %p136
      %p138 = scmp.ne.s32.totalorder %s126, %s127
      %p139 = scmp.eq.s32.totalorder %s30, 1
      %p140 = por %p138, %p139
      %p142 = scmp.ne.s32.totalorder %s127, %s141
      %p143 = scmp.eq.s32.totalorder %s30, 0
      %p144 = por %p142, %p143
      %s146 = sadd.s32 %s145, 1
      %p149 = scmp.eq.s32.totalorder %s24, 1
      %p150 = scmp.ne.s32.totalorder %s145, %s147
      %p151 = scmp.eq.s32.totalorder %s24, 0
      %p152 = por %p150, %p151
      %p153 = scmp.ne.s32.totalorder %s145, %s147
      %p154 = scmp.eq.s32.totalorder %s29, 1
      %p155 = por %p153, %p154
      %p156 = scmp.ne.s32.totalorder %s147, %s148
      %p157 = scmp.eq.s32.totalorder %s29, 0
      %p158 = por %p156, %p157
      %p159 = scmp.ne.s32.totalorder %s147, %s148
      %p160 = scmp.eq.s32.totalorder %s30, 1
      %p161 = por %p159, %p160
      %p163 = scmp.ne.s32.totalorder %s148, %s162
      %p164 = scmp.eq.s32.totalorder %s30, 0
      %p165 = por %p163, %p164
      %s167 = sadd.s32 %s166, 1
      %p170 = scmp.eq.s32.totalorder %s24, 1
      %p171 = scmp.ne.s32.totalorder %s166, %s168
      %p172 = scmp.eq.s32.totalorder %s24, 0
      %p173 = por %p171, %p172
      %p174 = scmp.ne.s32.totalorder %s166, %s168
      %p175 = scmp.eq.s32.totalorder %s29, 1
      %p176 = por %p174, %p175
      %p177 = scmp.ne.s32.totalorder %s168, %s169
      %p178 = scmp.eq.s32.totalorder %s29, 0
      %p179 = por %p177, %p178
      %p180 = scmp.ne.s32.totalorder %s168, %s169
      %p181 = scmp.eq.s32.totalorder %s30, 1
      %p182 = por %p180, %p181
      %p184 = scmp.ne.s32.totalorder %s169, %s183
      %p185 = scmp.eq.s32.totalorder %s30, 0
      %p186 = por %p184, %p185
      %s188 = sadd.s32 %s187, 1
      %p191 = scmp.eq.s32.totalorder %s24, 1
      %p192 = scmp.ne.s32.totalorder %s187, %s189
      %p193 = scmp.eq.s32.totalorder %s24, 0
      %p194 = por %p192, %p193
      %p195 = scmp.ne.s32.totalorder %s187, %s189
      %p196 = scmp.eq.s32.totalorder %s29, 1
      %p197 = por %p195, %p196
      %p198 = scmp.ne.s32.totalorder %s189, %s190
      %p199 = scmp.eq.s32.totalorder %s29, 0
      %p200 = por %p198, %p199
      %p201 = scmp.ne.s32.totalorder %s189, %s190
      %p202 = scmp.eq.s32.totalorder %s30, 1
      %p203 = por %p201, %p202
      %p205 = scmp.ne.s32.totalorder %s190, %s204
      %p206 = scmp.eq.s32.totalorder %s30, 0
      %p207 = por %p205, %p206
      %s208 = ssub.s32 %s31, %s43
      %s209 = ssub.s32 %s32, %s39
      %s210 = sor.u32 %s208, %s209
      %p211 = scmp.eq.s32.totalorder %s210, 0
      %s213 = sadd.s32 %s212, 1
      %s214 = scalar_select %p211, %s212, %s213
      %p217 = pneg %p211
      %p218 = scmp.eq.s32.totalorder %s24, 1
      %p219 = por %p217, %p218
      %p220 = scmp.ne.s32.totalorder %s212, %s215
      %p221 = scmp.eq.s32.totalorder %s24, 0
      %p222 = por %p220, %p221
      %p223 = scmp.ne.s32.totalorder %s212, %s215
      %p224 = scmp.eq.s32.totalorder %s29, 1
      %p225 = por %p223, %p224
      %p226 = scmp.ne.s32.totalorder %s215, %s216
      %p227 = scmp.eq.s32.totalorder %s29, 0
      %p228 = por %p226, %p227
      %p229 = scmp.ne.s32.totalorder %s215, %s216
      %p230 = scmp.eq.s32.totalorder %s30, 1
      %p231 = por %p229, %p230
      %p233 = scmp.ne.s32.totalorder %s216, %s232
      %p234 = scmp.eq.s32.totalorder %s30, 0
      %p235 = por %p233, %p234
      %p236 = scmp.le.s32.totalorder 1, %s24
      %p237 = scmp.lt.s32.totalorder %s24, 3
      %p238 = pnand %p236, %p237
      %p239 = pneg %p238
      // Predicated region
      $region9: #{tpu_custom_call.1} parent=5 // pred_check
        _
      $region10: #{tpu_custom_call.1} parent=5 // pred_check_branch
        %241 = sbr.rel (%p238) target = $region12
      $region11: #{tpu_custom_call.1} parent=5 // pred_region
        %s242 = ssub.s32 %s24, 1
        // Predicated region
        $region13: #{tpu_custom_call.1} parent=11 // pred_check
          %p243 = pneg %p137
        $region14: #{tpu_custom_call.1} parent=11 // pred_check_branch
          %245 = sbr.rel (%p243) target = $region16
        $region15: #{tpu_custom_call.1} parent=11 // pred_region
          %247 = vsyncadd [#allocation9], 0
          %s248 = sshll.u32 %s3, 4
          %s249 = int_to_ptr.hbm [resolvable:$true] %s248
          %s250 = sshll.u32 [#allocation8], 4
          %s251 = int_to_ptr.vmem [resolvable:$true] %s250
          %256 = dma.hbm_to_vmem [thread:$0]  %s249, 512, %s251, [#allocation9], 128, 128, 8
        $region16: #{tpu_custom_call.1} parent=11 // pred_fallthru
          _
        // Predicated region
        $region17: #{tpu_custom_call.1} parent=11 // pred_check
          %p257 = pneg %p158
        $region18: #{tpu_custom_call.1} parent=11 // pred_check_branch
          %259 = sbr.rel (%p257) target = $region20
        $region19: #{tpu_custom_call.1} parent=11 // pred_region
          %261 = vsyncadd [#allocation9], 0
          %s262 = sshll.u32 %s4, 4
          %s263 = int_to_ptr.hbm [resolvable:$true] %s262
          %s264 = sshll.u32 [#allocation10], 4
          %s265 = int_to_ptr.vmem [resolvable:$true] %s264
          %270 = dma.hbm_to_vmem [thread:$0]  %s263, 512, %s265, [#allocation9], 128, 128, 8
        $region20: #{tpu_custom_call.1} parent=11 // pred_fallthru
          _
        // Predicated region
        $region21: #{tpu_custom_call.1} parent=11 // pred_check
          %p271 = pneg %p179
        $region22: #{tpu_custom_call.1} parent=11 // pred_check_branch
          %273 = sbr.rel (%p271) target = $region24
        $region23: #{tpu_custom_call.1} parent=11 // pred_region
          %275 = vsyncadd [#allocation12], 0
          %s276 = sshll.u32 %s5, 4
          %s277 = int_to_ptr.hbm [resolvable:$true] %s276
          %s278 = sshll.u32 [#allocation11], 4
          %s279 = int_to_ptr.vmem [resolvable:$true] %s278
          %284 = dma.hbm_to_vmem [thread:$0]  %s277, 512, %s279, [#allocation12], 128, 128, 8
        $region24: #{tpu_custom_call.1} parent=11 // pred_fallthru
          _
        // Predicated region
        $region25: #{tpu_custom_call.1} parent=11 // pred_check
          %p285 = pneg %p200
        $region26: #{tpu_custom_call.1} parent=11 // pred_check_branch
          %287 = sbr.rel (%p285) target = $region28
        $region27: #{tpu_custom_call.1} parent=11 // pred_region
          %289 = vsyncadd [#allocation12], 0
          %s290 = sshll.u32 %s6, 4
          %s291 = int_to_ptr.hbm [resolvable:$true] %s290
          %s292 = sshll.u32 [#allocation13], 4
          %s293 = int_to_ptr.vmem [resolvable:$true] %s292
          %298 = dma.hbm_to_vmem [thread:$0]  %s291, 512, %s293, [#allocation12], 128, 128, 8
        $region28: #{tpu_custom_call.1} parent=11 // pred_fallthru
          _
      $region12: #{tpu_custom_call.1} parent=5 // pred_fallthru
        _
      %p299 = scmp.lt.s32.totalorder %s24, 2
      // Predicated region
      $region29: #{tpu_custom_call.1} parent=5 // pred_check
        %p300 = pneg %p299
      $region30: #{tpu_custom_call.1} parent=5 // pred_check_branch
        %302 = sbr.rel (%p300) target = $region32
      $region31: #{tpu_custom_call.1} parent=5 // pred_region
        // Predicated region
        $region33: #{tpu_custom_call.1} parent=31 // pred_check
          %p303 = pneg %p58
        $region34: #{tpu_custom_call.1} parent=31 // pred_check_branch
          %305 = sbr.rel (%p303) target = $region36
        $region35: #{tpu_custom_call.1} parent=31 // pred_region
          %s306 = sand.u32 %s48, 1
          %s307 = scalar_lea.sflag [#allocation3], %s306
          %s308 = sand.u32 %s48, 1
          %s309 = smul.addr %s308, 8
          %s310 = scalar_lea.vmem [#allocation2], %s309
          %312 = vsyncadd %s307, 0
          %s313 = sadd.s32 %s32, %s31
          %s314 = smul.addr %s313, 8
          %s315 = scalar_lea.hbm %s0, %s314
          %s317 = sshll.u32 %s315, 4
          %s318 = int_to_ptr.hbm [resolvable:$true] %s317
          %s319 = sshll.u32 %s310, 4
          %s320 = int_to_ptr.vmem [resolvable:$true] %s319
          %322 = dma.hbm_to_vmem [thread:$0]  %s318, 128, %s320, %s307
        $region36: #{tpu_custom_call.1} parent=31 // pred_fallthru
          _
        // Predicated region
        $region37: #{tpu_custom_call.1} parent=31 // pred_check
          %p323 = pneg %p84
        $region38: #{tpu_custom_call.1} parent=31 // pred_check_branch
          %325 = sbr.rel (%p323) target = $region40
        $region39: #{tpu_custom_call.1} parent=31 // pred_region
          %s326 = sand.u32 %s24, 1
          %s327 = scalar_lea.sflag [#allocation6], %s326
          %s328 = sand.u32 %s74, 1
          %s329 = smul.addr %s328, 8
          %s330 = scalar_lea.vmem [#allocation5], %s329
          %332 = vsyncadd %s327, 0
          %s333 = smul.addr %s31, 8
          %s334 = scalar_lea.hbm %s1, %s333
          %s336 = sshll.u32 %s334, 4
          %s337 = int_to_ptr.hbm [resolvable:$true] %s336
          %s338 = sshll.u32 %s330, 4
          %s339 = int_to_ptr.vmem [resolvable:$true] %s338
          %341 = dma.hbm_to_vmem [thread:$0]  %s337, 128, %s339, %s327
        $region40: #{tpu_custom_call.1} parent=31 // pred_fallthru
          _
        // Predicated region
        $region41: #{tpu_custom_call.1} parent=31 // pred_check
          %p342 = pneg %p110
        $region42: #{tpu_custom_call.1} parent=31 // pred_check_branch
          %344 = sbr.rel (%p342) target = $region44
        $region43: #{tpu_custom_call.1} parent=31 // pred_region
          %s345 = sand.u32 %s24, 1
          %s346 = scalar_lea.sflag [#allocation6], %s345
          %s347 = sand.u32 %s100, 1
          %s348 = smul.addr %s347, 8
          %s349 = scalar_lea.vmem [#allocation7], %s348
          %351 = vsyncadd %s346, 0
          %s352 = smul.addr %s31, 8
          %s353 = scalar_lea.hbm %s2, %s352
          %s355 = sshll.u32 %s353, 4
          %s356 = int_to_ptr.hbm [resolvable:$true] %s355
          %s357 = sshll.u32 %s349, 4
          %s358 = int_to_ptr.vmem [resolvable:$true] %s357
          %360 = dma.hbm_to_vmem [thread:$0]  %s356, 128, %s358, %s346
        $region44: #{tpu_custom_call.1} parent=31 // pred_fallthru
          _
      $region32: #{tpu_custom_call.1} parent=5 // pred_fallthru
        _
      %p361 = scmp.le.s32.totalorder 1, %s24
      %p362 = scmp.lt.s32.totalorder %s24, 3
      %p363 = pnand %p361, %p362
      %p364 = pneg %p363
      // Predicated region
      $region45: #{tpu_custom_call.1} parent=5 // pred_check
        _
      $region46: #{tpu_custom_call.1} parent=5 // pred_check_branch
        %366 = sbr.rel (%p363) target = $region48
      $region47: #{tpu_custom_call.1} parent=5 // pred_region
        %s367 = ssub.s32 %s24, 1
        %s368 = sand.u32 %s51, 1
        %s369 = scalar_lea.sflag [#allocation3], %s368
        %s370 = sand.u32 %s51, 1
        %s371 = smul.addr %s370, 8
        %s372 = scalar_lea.vmem [#allocation2], %s371
        // Predicated region
        $region49: #{tpu_custom_call.1} parent=47 // pred_check
          %p373 = pneg %p64
        $region50: #{tpu_custom_call.1} parent=47 // pred_check_branch
          %375 = sbr.rel (%p373) target = $region52
        $region51: #{tpu_custom_call.1} parent=47 // pred_region
          %377 = dma.done %s369, 128
        $region52: #{tpu_custom_call.1} parent=47 // pred_fallthru
          _
        %s378 = sand.u32 %s29, 1
        %s379 = scalar_lea.sflag [#allocation6], %s378
        %s380 = sand.u32 %s77, 1
        %s381 = smul.addr %s380, 8
        %s382 = scalar_lea.vmem [#allocation5], %s381
        // Predicated region
        $region53: #{tpu_custom_call.1} parent=47 // pred_check
          %p383 = pneg %p90
        $region54: #{tpu_custom_call.1} parent=47 // pred_check_branch
          %385 = sbr.rel (%p383) target = $region56
        $region55: #{tpu_custom_call.1} parent=47 // pred_region
          %387 = dma.done %s379, 128
        $region56: #{tpu_custom_call.1} parent=47 // pred_fallthru
          _
        %s388 = sand.u32 %s29, 1
        %s389 = scalar_lea.sflag [#allocation6], %s388
        %s390 = sand.u32 %s103, 1
        %s391 = smul.addr %s390, 8
        %s392 = scalar_lea.vmem [#allocation7], %s391
        // Predicated region
        $region57: #{tpu_custom_call.1} parent=47 // pred_check
          %p393 = pneg %p116
        $region58: #{tpu_custom_call.1} parent=47 // pred_check_branch
          %395 = sbr.rel (%p393) target = $region60
        $region59: #{tpu_custom_call.1} parent=47 // pred_region
          %397 = dma.done %s389, 128
        $region60: #{tpu_custom_call.1} parent=47 // pred_fallthru
          _
        // Predicated region
        $region61: #{tpu_custom_call.1} parent=47 // pred_check
          %p398 = pneg %p137
        $region62: #{tpu_custom_call.1} parent=47 // pred_check_branch
          %400 = sbr.rel (%p398) target = $region64
        $region63: #{tpu_custom_call.1} parent=47 // pred_region
          %402 = dma.done [#allocation9], 512
        $region64: #{tpu_custom_call.1} parent=47 // pred_fallthru
          _
        // Predicated region
        $region65: #{tpu_custom_call.1} parent=47 // pred_check
          %p403 = pneg %p158
        $region66: #{tpu_custom_call.1} parent=47 // pred_check_branch
          %405 = sbr.rel (%p403) target = $region68
        $region67: #{tpu_custom_call.1} parent=47 // pred_region
          %407 = dma.done [#allocation9], 512
        $region68: #{tpu_custom_call.1} parent=47 // pred_fallthru
          _
        // Predicated region
        $region69: #{tpu_custom_call.1} parent=47 // pred_check
          %p408 = pneg %p179
        $region70: #{tpu_custom_call.1} parent=47 // pred_check_branch
          %410 = sbr.rel (%p408) target = $region72
        $region71: #{tpu_custom_call.1} parent=47 // pred_region
          %412 = dma.done [#allocation12], 512
        $region72: #{tpu_custom_call.1} parent=47 // pred_fallthru
          _
        // Predicated region
        $region73: #{tpu_custom_call.1} parent=47 // pred_check
          %p413 = pneg %p200
        $region74: #{tpu_custom_call.1} parent=47 // pred_check_branch
          %415 = sbr.rel (%p413) target = $region76
        $region75: #{tpu_custom_call.1} parent=47 // pred_region
          %417 = dma.done [#allocation12], 512
        $region76: #{tpu_custom_call.1} parent=47 // pred_fallthru
          _
        %s418 = sand.u32 %s51, 1
        %s419 = scalar_lea.sflag [#allocation3], %s418
        %s420 = sand.u32 %s51, 1
        %s421 = smul.addr %s420, 8
        %s422 = scalar_lea.vmem [#allocation2], %s421
        %p423 = pneg %p64
        %p424 = pneg %p61
        %s425 = sand.u32 %s29, 1
        %s426 = scalar_lea.sflag [#allocation6], %s425
        %s427 = sand.u32 %s77, 1
        %s428 = smul.addr %s427, 8
        %s429 = scalar_lea.vmem [#allocation5], %s428
        %p430 = pneg %p90
        %p431 = pneg %p87
        %s432 = sand.u32 %s29, 1
        %s433 = scalar_lea.sflag [#allocation6], %s432
        %s434 = sand.u32 %s103, 1
        %s435 = smul.addr %s434, 8
        %s436 = scalar_lea.vmem [#allocation7], %s435
        %p437 = pneg %p116
        %p438 = pneg %p113
        %p439 = pneg %p137
        %p440 = pneg %p134
        %p441 = pneg %p158
        %p442 = pneg %p155
        %p443 = pneg %p179
        %p444 = pneg %p176
        %p445 = pneg %p200
        %p446 = pneg %p197
        %p447 = pneg %p228
        %p448 = pneg %p225
        %s449 = sand.u32 %s215, 1
        %s450 = scalar_lea.sflag [#allocation4], %s449
        %s451 = sand.u32 %s215, 1
        %s452 = smul.addr %s451, 8
        %s453 = scalar_lea.vmem [#allocation14], %s452
        %v455 = vld [vmem:[%s372] sm:$0xff]
        %v456 = vpack.c.bf16 %v455, %v455
        %v457 = vld [vmem:[%s382] sm:$0xff]
        %v458 = vpack.c.bf16 %v457, %v457
        %v459 = vld [vmem:[%s392] sm:$0xff]
        %v460 = vpack.c.bf16 %v459, %v459
        %v461 = vld [vmem:[#allocation8] sm:$0xff]
        %v462 = vld [vmem:[#allocation8 + $0x8] sm:$0xff]
        %v463 = vld [vmem:[#allocation8 + $0x10] sm:$0xff]
        %v464 = vld [vmem:[#allocation8 + $0x18] sm:$0xff]
        %v465 = vpack.c.bf16 %v462, %v461
        %v466 = vpack.c.bf16 %v464, %v463
        %vm467 = vcmask 261120
        %v469 = vsel %vm467, %v456, 0
        %v472 = vsel %vm467, %v465, 0
        %v475 = vsel %vm467, %v466, 0
        %477 = vmatpush.bf16.xpose.msra.mxu0 0
        %478 = vmatpush.bf16.xpose.msra.mxu0 0
        %479 = vmatpush.bf16.xpose.msra.mxu0 0
        %480 = vmatpush.bf16.xpose.msra.mxu0 0
        %481 = vmatpush.bf16.xpose.msra.mxu0 0
        %482 = vmatpush.bf16.xpose.msra.mxu0 0
        %483 = vmatpush.bf16.xpose.msra.mxu0 %v475
        %484 = vmatpush.bf16.xpose.msra.mxu0 %v472
        %485 = vmatmul.bf16.gmra.mxu0 %v469
        %v486 = vpop.f32.mrf.mxu0
        %v487 = vadd.f32 0.0, %v486
        %v488 = vpop.f32.mrf.mxu0
        %489 = vdwg.mxu0
        %v490 = vld [vmem:[#allocation10] sm:$0xff]
        %v491 = vld [vmem:[#allocation10 + $0x8] sm:$0xff]
        %v492 = vld [vmem:[#allocation10 + $0x10] sm:$0xff]
        %v493 = vld [vmem:[#allocation10 + $0x18] sm:$0xff]
        %v494 = vpack.c.bf16 %v491, %v490
        %v495 = vpack.c.bf16 %v493, %v492
        %v497 = vsel %vm467, %v458, 0
        %v500 = vsel %vm467, %v494, 0
        %v503 = vsel %vm467, %v495, 0
        %505 = vmatpush.bf16.xpose.msra.mxu0 0
        %506 = vmatpush.bf16.xpose.msra.mxu0 0
        %507 = vmatpush.bf16.xpose.msra.mxu0 0
        %508 = vmatpush.bf16.xpose.msra.mxu0 0
        %509 = vmatpush.bf16.xpose.msra.mxu0 0
        %510 = vmatpush.bf16.xpose.msra.mxu0 0
        %511 = vmatpush.bf16.xpose.msra.mxu0 %v503
        %512 = vmatpush.bf16.xpose.msra.mxu0 %v500
        %513 = vmatmul.bf16.gmra.mxu0 %v497
        %v514 = vpop.f32.mrf.mxu0
        %v515 = vadd.f32 0.0, %v514
        %v516 = vpop.f32.mrf.mxu0
        %517 = vdwg.mxu0
        %v518 = vld [vmem:[#allocation11] sm:$0xff]
        %v519 = vld [vmem:[#allocation11 + $0x8] sm:$0xff]
        %v520 = vld [vmem:[#allocation11 + $0x10] sm:$0xff]
        %v521 = vld [vmem:[#allocation11 + $0x18] sm:$0xff]
        %v522 = vpack.c.bf16 %v519, %v518
        %v523 = vpack.c.bf16 %v521, %v520
        %v525 = vsel %vm467, %v460, 0
        %v528 = vsel %vm467, %v522, 0
        %v531 = vsel %vm467, %v523, 0
        %533 = vmatpush.bf16.xpose.msra.mxu0 0
        %534 = vmatpush.bf16.xpose.msra.mxu0 0
        %535 = vmatpush.bf16.xpose.msra.mxu0 0
        %536 = vmatpush.bf16.xpose.msra.mxu0 0
        %537 = vmatpush.bf16.xpose.msra.mxu0 0
        %538 = vmatpush.bf16.xpose.msra.mxu0 0
        %539 = vmatpush.bf16.xpose.msra.mxu0 %v531
        %540 = vmatpush.bf16.xpose.msra.mxu0 %v528
        %541 = vmatmul.bf16.gmra.mxu0 %v525
        %v542 = vpop.f32.mrf.mxu0
        %v543 = vadd.f32 0.0, %v542
        %v544 = vpop.f32.mrf.mxu0
        %545 = vdwg.mxu0
        %v546 = vmul.f32 %v487, 0.35355338
        %548 = vrot.lane.b32.xlu0 %v546, 120
        %v549 = vpop.permute.xlu0 %548
        %551 = vrot.lane.b32.xlu0 %v546, 112
        %v552 = vpop.permute.xlu0 %551
        %554 = vrot.lane.b32.xlu0 %v546, 104
        %v555 = vpop.permute.xlu0 %554
        %v557 = vrot.slane %v552, 4
        %vm558 = vcmask 1047556
        %v559 = vsel %vm558, %v557, %v546
        %v560 = vrot.slane %v546, 4
        %v561 = vsel %vm558, %v552, %v560
        %v563 = vunpack.c.l.s4 1983009808
        %v564 = vunpack.c.0.s8 %v563
        %v565 = vperm.slane %v559, %v564
        %v567 = vunpack.c.l.s4 1983009808
        %v568 = vunpack.c.0.s8 %v567
        %v569 = vperm.slane %v561, %v568
        %v570 = vrot.slane %v555, 4
        %v571 = vsel %vm558, %v570, %v549
        %v572 = vrot.slane %v549, 4
        %v573 = vsel %vm558, %v555, %v572
        %v575 = vunpack.c.l.s4 1983009808
        %v576 = vunpack.c.0.s8 %v575
        %v577 = vperm.slane %v571, %v576
        %v579 = vunpack.c.l.s4 1983009808
        %v580 = vunpack.c.0.s8 %v579
        %v581 = vperm.slane %v573, %v580
        %v582 = vrot.slane %v577, 4
        %v583 = vsel %vm558, %v582, %v565
        %v584 = vrot.slane %v565, 4
        %v585 = vsel %vm558, %v577, %v584
        %v587 = vunpack.c.l.s4 1934713408
        %v588 = vunpack.c.0.s8 %v587
        %v589 = vperm.slane %v583, %v588
        %v591 = vunpack.c.l.s4 1934713408
        %v592 = vunpack.c.0.s8 %v591
        %v593 = vperm.slane %v585, %v592
        %v594 = vrot.slane %v581, 4
        %v595 = vsel %vm558, %v594, %v569
        %v596 = vrot.slane %v569, 4
        %v597 = vsel %vm558, %v581, %v596
        %v599 = vunpack.c.l.s4 1934713408
        %v600 = vunpack.c.0.s8 %v599
        %v601 = vperm.slane %v595, %v600
        %v603 = vunpack.c.l.s4 1934713408
        %v604 = vunpack.c.0.s8 %v603
        %v605 = vperm.slane %v597, %v604
        %v606 = vrot.slane %v589, 4
        %v607 = vsel %vm558, 0.0, %v606
        %v608 = vrot.slane %v593, 4
        %v609 = vsel %vm558, 0.0, %v608
        %v610 = vrot.slane %v601, 4
        %v611 = vsel %vm558, 0.0, %v610
        %v612 = vrot.slane %v605, 4
        %v613 = vsel %vm558, 0.0, %v612
        %v614 = vsel %vm558, %v608, %v589
        %v616 = vunpack.c.l.s4 1983009808
        %v617 = vunpack.c.0.s8 %v616
        %v618 = vperm.slane %v614, %v617
        %v619 = vrot.slane %v609, 4
        %v620 = vsel %vm558, %v619, %v607
        %v622 = vunpack.c.l.s4 1983009808
        %v623 = vunpack.c.0.s8 %v622
        %v624 = vperm.slane %v620, %v623
        %v625 = vsel %vm558, %v612, %v601
        %v627 = vunpack.c.l.s4 1983009808
        %v628 = vunpack.c.0.s8 %v627
        %v629 = vperm.slane %v625, %v628
        %v630 = vrot.slane %v613, 4
        %v631 = vsel %vm558, %v630, %v611
        %v633 = vunpack.c.l.s4 1983009808
        %v634 = vunpack.c.0.s8 %v633
        %v635 = vperm.slane %v631, %v634
        %v636 = vrot.slane %v624, 4
        %v637 = vsel %vm558, %v636, %v618
        %v638 = vrot.slane %v618, 4
        %v639 = vsel %vm558, %v624, %v638
        %v641 = vunpack.c.l.s4 1934713408
        %v642 = vunpack.c.0.s8 %v641
        %v643 = vperm.slane %v637, %v642
        %v645 = vunpack.c.l.s4 1934713408
        %v646 = vunpack.c.0.s8 %v645
        %v647 = vperm.slane %v639, %v646
        %v648 = vrot.slane %v635, 4
        %v649 = vsel %vm558, %v648, %v629
        %v650 = vrot.slane %v629, 4
        %v651 = vsel %vm558, %v635, %v650
        %v653 = vunpack.c.l.s4 1934713408
        %v654 = vunpack.c.0.s8 %v653
        %v655 = vperm.slane %v649, %v654
        %v657 = vunpack.c.l.s4 1934713408
        %v658 = vunpack.c.0.s8 %v657
        %v659 = vperm.slane %v651, %v658
        %v660 = vrot.slane %v655, 4
        %v661 = vsel %vm558, %v660, %v643
        %v662 = vrot.slane %v643, 4
        %v663 = vsel %vm558, %v655, %v662
        %v664 = vrot.slane %v659, 4
        %v665 = vsel %vm558, %v664, %v647
        %v666 = vrot.slane %v647, 4
        %v667 = vsel %vm558, %v659, %v666
        %669 = vrot.lane.b32.xlu0 %v515, 120
        %v670 = vpop.permute.xlu0 %669
        %672 = vrot.lane.b32.xlu0 %v515, 112
        %v673 = vpop.permute.xlu0 %672
        %675 = vrot.lane.b32.xlu0 %v515, 104
        %v676 = vpop.permute.xlu0 %675
        %v678 = vrot.slane %v673, 4
        %v679 = vsel %vm558, %v678, %v515
        %v680 = vrot.slane %v515, 4
        %v681 = vsel %vm558, %v673, %v680
        %v683 = vunpack.c.l.s4 1983009808
        %v684 = vunpack.c.0.s8 %v683
        %v685 = vperm.slane %v679, %v684
        %v687 = vunpack.c.l.s4 1983009808
        %v688 = vunpack.c.0.s8 %v687
        %v689 = vperm.slane %v681, %v688
        %v690 = vrot.slane %v676, 4
        %v691 = vsel %vm558, %v690, %v670
        %v692 = vrot.slane %v670, 4
        %v693 = vsel %vm558, %v676, %v692
        %v695 = vunpack.c.l.s4 1983009808
        %v696 = vunpack.c.0.s8 %v695
        %v697 = vperm.slane %v691, %v696
        %v699 = vunpack.c.l.s4 1983009808
        %v700 = vunpack.c.0.s8 %v699
        %v701 = vperm.slane %v693, %v700
        %v702 = vrot.slane %v697, 4
        %v703 = vsel %vm558, %v702, %v685
        %v704 = vrot.slane %v685, 4
        %v705 = vsel %vm558, %v697, %v704
        %v707 = vunpack.c.l.s4 1934713408
        %v708 = vunpack.c.0.s8 %v707
        %v709 = vperm.slane %v703, %v708
        %v711 = vunpack.c.l.s4 1934713408
        %v712 = vunpack.c.0.s8 %v711
        %v713 = vperm.slane %v705, %v712
        %v714 = vrot.slane %v701, 4
        %v715 = vsel %vm558, %v714, %v689
        %v716 = vrot.slane %v689, 4
        %v717 = vsel %vm558, %v701, %v716
        %v719 = vunpack.c.l.s4 1934713408
        %v720 = vunpack.c.0.s8 %v719
        %v721 = vperm.slane %v715, %v720
        %v723 = vunpack.c.l.s4 1934713408
        %v724 = vunpack.c.0.s8 %v723
        %v725 = vperm.slane %v717, %v724
        %v726 = vrot.slane %v709, 4
        %v727 = vsel %vm558, 0.0, %v726
        %v728 = vrot.slane %v713, 4
        %v729 = vsel %vm558, 0.0, %v728
        %v730 = vrot.slane %v721, 4
        %v731 = vsel %vm558, 0.0, %v730
        %v732 = vrot.slane %v725, 4
        %v733 = vsel %vm558, 0.0, %v732
        %v734 = vsel %vm558, %v728, %v709
        %v736 = vunpack.c.l.s4 1983009808
        %v737 = vunpack.c.0.s8 %v736
        %v738 = vperm.slane %v734, %v737
        %v739 = vrot.slane %v729, 4
        %v740 = vsel %vm558, %v739, %v727
        %v742 = vunpack.c.l.s4 1983009808
        %v743 = vunpack.c.0.s8 %v742
        %v744 = vperm.slane %v740, %v743
        %v745 = vsel %vm558, %v732, %v721
        %v747 = vunpack.c.l.s4 1983009808
        %v748 = vunpack.c.0.s8 %v747
        %v749 = vperm.slane %v745, %v748
        %v750 = vrot.slane %v733, 4
        %v751 = vsel %vm558, %v750, %v731
        %v753 = vunpack.c.l.s4 1983009808
        %v754 = vunpack.c.0.s8 %v753
        %v755 = vperm.slane %v751, %v754
        %v756 = vrot.slane %v744, 4
        %v757 = vsel %vm558, %v756, %v738
        %v758 = vrot.slane %v738, 4
        %v759 = vsel %vm558, %v744, %v758
        %v761 = vunpack.c.l.s4 1934713408
        %v762 = vunpack.c.0.s8 %v761
        %v763 = vperm.slane %v757, %v762
        %v765 = vunpack.c.l.s4 1934713408
        %v766 = vunpack.c.0.s8 %v765
        %v767 = vperm.slane %v759, %v766
        %v768 = vrot.slane %v755, 4
        %v769 = vsel %vm558, %v768, %v749
        %v770 = vrot.slane %v749, 4
        %v771 = vsel %vm558, %v755, %v770
        %v773 = vunpack.c.l.s4 1934713408
        %v774 = vunpack.c.0.s8 %v773
        %v775 = vperm.slane %v769, %v774
        %v777 = vunpack.c.l.s4 1934713408
        %v778 = vunpack.c.0.s8 %v777
        %v779 = vperm.slane %v771, %v778
        %v780 = vrot.slane %v775, 4
        %v781 = vsel %vm558, %v780, %v763
        %v782 = vrot.slane %v763, 4
        %v783 = vsel %vm558, %v775, %v782
        %v784 = vrot.slane %v779, 4
        %v785 = vsel %vm558, %v784, %v767
        %v786 = vrot.slane %v767, 4
        %v787 = vsel %vm558, %v779, %v786
        %789 = vrot.lane.b32.xlu0 %v543, 120
        %v790 = vpop.permute.xlu0 %789
        %792 = vrot.lane.b32.xlu0 %v543, 112
        %v793 = vpop.permute.xlu0 %792
        %795 = vrot.lane.b32.xlu0 %v543, 104
        %v796 = vpop.permute.xlu0 %795
        %v798 = vrot.slane %v793, 4
        %v799 = vsel %vm558, %v798, %v543
        %v800 = vrot.slane %v543, 4
        %v801 = vsel %vm558, %v793, %v800
        %v803 = vunpack.c.l.s4 1983009808
        %v804 = vunpack.c.0.s8 %v803
        %v805 = vperm.slane %v799, %v804
        %v807 = vunpack.c.l.s4 1983009808
        %v808 = vunpack.c.0.s8 %v807
        %v809 = vperm.slane %v801, %v808
        %v810 = vrot.slane %v796, 4
        %v811 = vsel %vm558, %v810, %v790
        %v812 = vrot.slane %v790, 4
        %v813 = vsel %vm558, %v796, %v812
        %v815 = vunpack.c.l.s4 1983009808
        %v816 = vunpack.c.0.s8 %v815
        %v817 = vperm.slane %v811, %v816
        %v819 = vunpack.c.l.s4 1983009808
        %v820 = vunpack.c.0.s8 %v819
        %v821 = vperm.slane %v813, %v820
        %v822 = vrot.slane %v817, 4
        %v823 = vsel %vm558, %v822, %v805
        %v824 = vrot.slane %v805, 4
        %v825 = vsel %vm558, %v817, %v824
        %v827 = vunpack.c.l.s4 1934713408
        %v828 = vunpack.c.0.s8 %v827
        %v829 = vperm.slane %v823, %v828
        %v831 = vunpack.c.l.s4 1934713408
        %v832 = vunpack.c.0.s8 %v831
        %v833 = vperm.slane %v825, %v832
        %v834 = vrot.slane %v821, 4
        %v835 = vsel %vm558, %v834, %v809
        %v836 = vrot.slane %v809, 4
        %v837 = vsel %vm558, %v821, %v836
        %v839 = vunpack.c.l.s4 1934713408
        %v840 = vunpack.c.0.s8 %v839
        %v841 = vperm.slane %v835, %v840
        %v843 = vunpack.c.l.s4 1934713408
        %v844 = vunpack.c.0.s8 %v843
        %v845 = vperm.slane %v837, %v844
        %v846 = vrot.slane %v829, 4
        %v847 = vsel %vm558, 0.0, %v846
        %v848 = vrot.slane %v833, 4
        %v849 = vsel %vm558, 0.0, %v848
        %v850 = vrot.slane %v841, 4
        %v851 = vsel %vm558, 0.0, %v850
        %v852 = vrot.slane %v845, 4
        %v853 = vsel %vm558, 0.0, %v852
        %v854 = vsel %vm558, %v848, %v829
        %v856 = vunpack.c.l.s4 1983009808
        %v857 = vunpack.c.0.s8 %v856
        %v858 = vperm.slane %v854, %v857
        %v859 = vrot.slane %v849, 4
        %v860 = vsel %vm558, %v859, %v847
        %v862 = vunpack.c.l.s4 1983009808
        %v863 = vunpack.c.0.s8 %v862
        %v864 = vperm.slane %v860, %v863
        %v865 = vsel %vm558, %v852, %v841
        %v867 = vunpack.c.l.s4 1983009808
        %v868 = vunpack.c.0.s8 %v867
        %v869 = vperm.slane %v865, %v868
        %v870 = vrot.slane %v853, 4
        %v871 = vsel %vm558, %v870, %v851
        %v873 = vunpack.c.l.s4 1983009808
        %v874 = vunpack.c.0.s8 %v873
        %v875 = vperm.slane %v871, %v874
        %v876 = vrot.slane %v864, 4
        %v877 = vsel %vm558, %v876, %v858
        %v878 = vrot.slane %v858, 4
        %v879 = vsel %vm558, %v864, %v878
        %v881 = vunpack.c.l.s4 1934713408
        %v882 = vunpack.c.0.s8 %v881
        %v883 = vperm.slane %v877, %v882
        %v885 = vunpack.c.l.s4 1934713408
        %v886 = vunpack.c.0.s8 %v885
        %v887 = vperm.slane %v879, %v886
        %v888 = vrot.slane %v875, 4
        %v889 = vsel %vm558, %v888, %v869
        %v890 = vrot.slane %v869, 4
        %v891 = vsel %vm558, %v875, %v890
        %v893 = vunpack.c.l.s4 1934713408
        %v894 = vunpack.c.0.s8 %v893
        %v895 = vperm.slane %v889, %v894
        %v897 = vunpack.c.l.s4 1934713408
        %v898 = vunpack.c.0.s8 %v897
        %v899 = vperm.slane %v891, %v898
        %v900 = vrot.slane %v895, 4
        %v901 = vsel %vm558, %v900, %v883
        %v902 = vrot.slane %v883, 4
        %v903 = vsel %vm558, %v895, %v902
        %v904 = vrot.slane %v899, 4
        %v905 = vsel %vm558, %v904, %v887
        %v906 = vrot.slane %v887, 4
        %v907 = vsel %vm558, %v899, %v906
        %v908 = vpack.c.bf16 %v661, %v661
        %v909 = vpack.c.bf16 %v663, %v663
        %v910 = vpack.c.bf16 %v665, %v665
        %v911 = vpack.c.bf16 %v667, %v667
        %v912 = vpack.c.bf16 %v781, %v781
        %v913 = vpack.c.bf16 %v783, %v783
        %v914 = vpack.c.bf16 %v785, %v785
        %v915 = vpack.c.bf16 %v787, %v787
        %vm916 = vcmask 64512
        %v918 = vsel %vm916, %v908, 0
        %v921 = vsel %vm916, %v912, 0
        %923 = vmatpush.bf16.xpose.msra.mxu0 0
        %924 = vmatpush.bf16.xpose.msra.mxu0 0
        %925 = vmatpush.bf16.xpose.msra.mxu0 0
        %926 = vmatpush.bf16.xpose.msra.mxu0 0
        %927 = vmatpush.bf16.xpose.msra.mxu0 0
        %928 = vmatpush.bf16.xpose.msra.mxu0 0
        %929 = vmatpush.bf16.xpose.msra.mxu0 0
        %930 = vmatpush.bf16.xpose.msra.mxu0 %v921
        %931 = vmatmul.bf16.gmra.mxu0 %v918
        %v932 = vpop.f32.mrf.mxu0
        %v933 = vadd.f32 0.0, %v932
        %v934 = vpop.f32.mrf.mxu0
        %935 = vdwg.mxu0
        %v937 = vsel %vm916, %v909, 0
        %v940 = vsel %vm916, %v913, 0
        %942 = vmatpush.bf16.xpose.msra.mxu0 0
        %943 = vmatpush.bf16.xpose.msra.mxu0 0
        %944 = vmatpush.bf16.xpose.msra.mxu0 0
        %945 = vmatpush.bf16.xpose.msra.mxu0 0
        %946 = vmatpush.bf16.xpose.msra.mxu0 0
        %947 = vmatpush.bf16.xpose.msra.mxu0 0
        %948 = vmatpush.bf16.xpose.msra.mxu0 0
        %949 = vmatpush.bf16.xpose.msra.mxu0 %v940
        %950 = vmatmul.bf16.gmra.mxu0 %v937
        %v951 = vpop.f32.mrf.mxu0
        %v952 = vadd.f32 0.0, %v951
        %v953 = vpop.f32.mrf.mxu0
        %954 = vdwg.mxu0
        %v956 = vsel %vm916, %v910, 0
        %v959 = vsel %vm916, %v914, 0
        %961 = vmatpush.bf16.xpose.msra.mxu0 0
        %962 = vmatpush.bf16.xpose.msra.mxu0 0
        %963 = vmatpush.bf16.xpose.msra.mxu0 0
        %964 = vmatpush.bf16.xpose.msra.mxu0 0
        %965 = vmatpush.bf16.xpose.msra.mxu0 0
        %966 = vmatpush.bf16.xpose.msra.mxu0 0
        %967 = vmatpush.bf16.xpose.msra.mxu0 0
        %968 = vmatpush.bf16.xpose.msra.mxu0 %v959
        %969 = vmatmul.bf16.gmra.mxu0 %v956
        %v970 = vpop.f32.mrf.mxu0
        %v971 = vadd.f32 0.0, %v970
        %v972 = vpop.f32.mrf.mxu0
        %973 = vdwg.mxu0
        %v975 = vsel %vm916, %v911, 0
        %v978 = vsel %vm916, %v915, 0
        %980 = vmatpush.bf16.xpose.msra.mxu0 0
        %981 = vmatpush.bf16.xpose.msra.mxu0 0
        %982 = vmatpush.bf16.xpose.msra.mxu0 0
        %983 = vmatpush.bf16.xpose.msra.mxu0 0
        %984 = vmatpush.bf16.xpose.msra.mxu0 0
        %985 = vmatpush.bf16.xpose.msra.mxu0 0
        %986 = vmatpush.bf16.xpose.msra.mxu0 0
        %987 = vmatpush.bf16.xpose.msra.mxu0 %v978
        %988 = vmatmul.bf16.gmra.mxu0 %v975
        %v989 = vpop.f32.mrf.mxu0
        %v990 = vadd.f32 0.0, %v989
        %v991 = vpop.f32.mrf.mxu0
        %992 = vdwg.mxu0
        %v993 = vsel %vm916, %v933, -inf
        %994 = vmax.xlane.f32.xlu0 %v993
        %v995 = vpop.xlane.xlu0 %994
        %v996 = vsel %vm916, %v952, -inf
        %997 = vmax.xlane.f32.xlu0 %v996
        %v998 = vpop.xlane.xlu0 %997
        %v999 = vsel %vm916, %v971, -inf
        %1000 = vmax.xlane.f32.xlu0 %v999
        %v1001 = vpop.xlane.xlu0 %1000
        %v1002 = vsel %vm916, %v990, -inf
        %1003 = vmax.xlane.f32.xlu0 %v1002
        %v1004 = vpop.xlane.xlu0 %1003
        %v1005 = vsub.f32 %v933, %v995
        %v1006 = vsub.f32 %v952, %v998
        %v1007 = vsub.f32 %v971, %v1001
        %v1008 = vsub.f32 %v990, %v1004
        %v1009 = vmul.f32 %v1005, 1.442695
        %v1010 = vpow.pop %v1009
        %v1011 = vmul.f32 %v1006, 1.442695
        %v1012 = vpow.pop %v1011
        %v1013 = vmul.f32 %v1007, 1.442695
        %v1014 = vpow.pop %v1013
        %v1015 = vmul.f32 %v1008, 1.442695
        %v1016 = vpow.pop %v1015
        %v1017 = vsel %vm916, %v1010, 0.0
        %1018 = vadd.xlane.f32.xlu0 %v1017
        %v1019 = vpop.xlane.xlu0 %1018
        %v1020 = vsel %vm916, %v1012, 0.0
        %1021 = vadd.xlane.f32.xlu0 %v1020
        %v1022 = vpop.xlane.xlu0 %1021
        %v1023 = vsel %vm916, %v1014, 0.0
        %1024 = vadd.xlane.f32.xlu0 %v1023
        %v1025 = vpop.xlane.xlu0 %1024
        %v1026 = vsel %vm916, %v1016, 0.0
        %1027 = vadd.xlane.f32.xlu0 %v1026
        %v1028 = vpop.xlane.xlu0 %1027
        %v1029 = vrcp.pop %v1019
        %v1030 = vmul.f32 %v1019, %v1029
        %v1031 = vsub.f32 1.0, %v1030
        %v1032 = vmul.f32 %v1029, %v1031
        %v1033 = vadd.f32 %v1029, %v1032
        %vm1034 = vweird.f32 %v1019
        %vm1035 = vweird.f32 %v1029
        %vm1036 = vmor %vm1034, %vm1035
        %v1037 = vsel %vm1036, %v1029, %v1033
        %v1038 = vand.u32 2147483647, %v1019
        %vm1039 = vcmp.eq.f32.partialorder %v1038, 8.507059e+37
        %v1040 = vand.u32 %v1019, 2147483648
        %v1041 = vor.u32 1.1754944e-38, %v1040
        %v1042 = vsel %vm1039, %v1041, %v1037
        %v1043 = vrcp.pop %v1022
        %v1044 = vmul.f32 %v1022, %v1043
        %v1045 = vsub.f32 1.0, %v1044
        %v1046 = vmul.f32 %v1043, %v1045
        %v1047 = vadd.f32 %v1043, %v1046
        %vm1048 = vweird.f32 %v1022
        %vm1049 = vweird.f32 %v1043
        %vm1050 = vmor %vm1048, %vm1049
        %v1051 = vsel %vm1050, %v1043, %v1047
        %v1052 = vand.u32 2147483647, %v1022
        %vm1053 = vcmp.eq.f32.partialorder %v1052, 8.507059e+37
        %v1054 = vand.u32 %v1022, 2147483648
        %v1055 = vor.u32 1.1754944e-38, %v1054
        %v1056 = vsel %vm1053, %v1055, %v1051
        %v1057 = vrcp.pop %v1025
        %v1058 = vmul.f32 %v1025, %v1057
        %v1059 = vsub.f32 1.0, %v1058
        %v1060 = vmul.f32 %v1057, %v1059
        %v1061 = vadd.f32 %v1057, %v1060
        %vm1062 = vweird.f32 %v1025
        %vm1063 = vweird.f32 %v1057
        %vm1064 = vmor %vm1062, %vm1063
        %v1065 = vsel %vm1064, %v1057, %v1061
        %v1066 = vand.u32 2147483647, %v1025
        %vm1067 = vcmp.eq.f32.partialorder %v1066, 8.507059e+37
        %v1068 = vand.u32 %v1025, 2147483648
        %v1069 = vor.u32 1.1754944e-38, %v1068
        %v1070 = vsel %vm1067, %v1069, %v1065
        %v1071 = vrcp.pop %v1028
        %v1072 = vmul.f32 %v1028, %v1071
        %v1073 = vsub.f32 1.0, %v1072
        %v1074 = vmul.f32 %v1071, %v1073
        %v1075 = vadd.f32 %v1071, %v1074
        %vm1076 = vweird.f32 %v1028
        %vm1077 = vweird.f32 %v1071
        %vm1078 = vmor %vm1076, %vm1077
        %v1079 = vsel %vm1078, %v1071, %v1075
        %v1080 = vand.u32 2147483647, %v1028
        %vm1081 = vcmp.eq.f32.partialorder %v1080, 8.507059e+37
        %v1082 = vand.u32 %v1028, 2147483648
        %v1083 = vor.u32 1.1754944e-38, %v1082
        %v1084 = vsel %vm1081, %v1083, %v1079
        %v1085 = vmul.f32 %v1010, %v1042
        %v1086 = vmul.f32 %v1012, %v1056
        %v1087 = vmul.f32 %v1014, %v1070
        %v1088 = vmul.f32 %v1016, %v1084
        %v1089 = vpack.c.bf16 %v1085, %v1085
        %v1090 = vpack.c.bf16 %v1086, %v1086
        %v1091 = vpack.c.bf16 %v1087, %v1087
        %v1092 = vpack.c.bf16 %v1088, %v1088
        %v1093 = vpack.c.bf16 %v901, %v901
        %v1094 = vpack.c.bf16 %v903, %v903
        %v1095 = vpack.c.bf16 %v905, %v905
        %v1096 = vpack.c.bf16 %v907, %v907
        %v1098 = vsel %vm916, %v1089, 0
        %vm1100 = vcmask 1043456
        %v1102 = vsel %vm1100, %v1093, 0
        %1104 = vmatpush.bf16.msra.mxu0 0
        %1105 = vmatpush.bf16.msra.mxu0 0
        %1106 = vmatpush.bf16.msra.mxu0 0
        %1107 = vmatpush.bf16.msra.mxu0 0
        %1108 = vmatpush.bf16.msra.mxu0 0
        %1109 = vmatpush.bf16.msra.mxu0 0
        %1110 = vmatpush.bf16.msra.mxu0 0
        %1111 = vmatpush.bf16.msra.mxu0 %v1102
        %1112 = vmatmul.bf16.gmra.mxu0 %v1098
        %v1113 = vpop.f32.mrf.mxu0
        %v1114 = vadd.f32 0.0, %v1113
        %v1115 = vpop.f32.mrf.mxu0
        %1116 = vdwg.mxu0
        %v1118 = vsel %vm916, %v1090, 0
        %v1121 = vsel %vm1100, %v1094, 0
        %1123 = vmatpush.bf16.msra.mxu0 0
        %1124 = vmatpush.bf16.msra.mxu0 0
        %1125 = vmatpush.bf16.msra.mxu0 0
        %1126 = vmatpush.bf16.msra.mxu0 0
        %1127 = vmatpush.bf16.msra.mxu0 0
        %1128 = vmatpush.bf16.msra.mxu0 0
        %1129 = vmatpush.bf16.msra.mxu0 0
        %1130 = vmatpush.bf16.msra.mxu0 %v1121
        %1131 = vmatmul.bf16.gmra.mxu0 %v1118
        %v1132 = vpop.f32.mrf.mxu0
        %v1133 = vadd.f32 0.0, %v1132
        %v1134 = vpop.f32.mrf.mxu0
        %1135 = vdwg.mxu0
        %v1137 = vsel %vm916, %v1091, 0
        %v1140 = vsel %vm1100, %v1095, 0
        %1142 = vmatpush.bf16.msra.mxu0 0
        %1143 = vmatpush.bf16.msra.mxu0 0
        %1144 = vmatpush.bf16.msra.mxu0 0
        %1145 = vmatpush.bf16.msra.mxu0 0
        %1146 = vmatpush.bf16.msra.mxu0 0
        %1147 = vmatpush.bf16.msra.mxu0 0
        %1148 = vmatpush.bf16.msra.mxu0 0
        %1149 = vmatpush.bf16.msra.mxu0 %v1140
        %1150 = vmatmul.bf16.gmra.mxu0 %v1137
        %v1151 = vpop.f32.mrf.mxu0
        %v1152 = vadd.f32 0.0, %v1151
        %v1153 = vpop.f32.mrf.mxu0
        %1154 = vdwg.mxu0
        %v1156 = vsel %vm916, %v1092, 0
        %v1159 = vsel %vm1100, %v1096, 0
        %1161 = vmatpush.bf16.msra.mxu0 0
        %1162 = vmatpush.bf16.msra.mxu0 0
        %1163 = vmatpush.bf16.msra.mxu0 0
        %1164 = vmatpush.bf16.msra.mxu0 0
        %1165 = vmatpush.bf16.msra.mxu0 0
        %1166 = vmatpush.bf16.msra.mxu0 0
        %1167 = vmatpush.bf16.msra.mxu0 0
        %1168 = vmatpush.bf16.msra.mxu0 %v1159
        %1169 = vmatmul.bf16.gmra.mxu0 %v1156
        %v1170 = vpop.f32.mrf.mxu0
        %v1171 = vadd.f32 0.0, %v1170
        %v1172 = vpop.f32.mrf.mxu0
        %1173 = vdwg.mxu0
        %v1174 = vrot.slane %v1152, 4
        %v1175 = vsel %vm558, %v1174, %v1114
        %v1176 = vrot.slane %v1114, 4
        %v1177 = vsel %vm558, %v1152, %v1176
        %v1179 = vunpack.c.l.s4 1983009808
        %v1180 = vunpack.c.0.s8 %v1179
        %v1181 = vperm.slane %v1175, %v1180
        %v1183 = vunpack.c.l.s4 1983009808
        %v1184 = vunpack.c.0.s8 %v1183
        %v1185 = vperm.slane %v1177, %v1184
        %v1186 = vrot.slane %v1171, 4
        %v1187 = vsel %vm558, %v1186, %v1133
        %v1188 = vrot.slane %v1133, 4
        %v1189 = vsel %vm558, %v1171, %v1188
        %v1191 = vunpack.c.l.s4 1983009808
        %v1192 = vunpack.c.0.s8 %v1191
        %v1193 = vperm.slane %v1187, %v1192
        %v1195 = vunpack.c.l.s4 1983009808
        %v1196 = vunpack.c.0.s8 %v1195
        %v1197 = vperm.slane %v1189, %v1196
        %v1198 = vrot.slane %v1193, 4
        %v1199 = vsel %vm558, %v1198, %v1181
        %v1200 = vrot.slane %v1181, 4
        %v1201 = vsel %vm558, %v1193, %v1200
        %v1203 = vunpack.c.l.s4 1934713408
        %v1204 = vunpack.c.0.s8 %v1203
        %v1205 = vperm.slane %v1199, %v1204
        %v1207 = vunpack.c.l.s4 1934713408
        %v1208 = vunpack.c.0.s8 %v1207
        %v1209 = vperm.slane %v1201, %v1208
        %v1210 = vrot.slane %v1197, 4
        %v1211 = vsel %vm558, %v1210, %v1185
        %v1212 = vrot.slane %v1185, 4
        %v1213 = vsel %vm558, %v1197, %v1212
        %v1215 = vunpack.c.l.s4 1934713408
        %v1216 = vunpack.c.0.s8 %v1215
        %v1217 = vperm.slane %v1211, %v1216
        %v1219 = vunpack.c.l.s4 1934713408
        %v1220 = vunpack.c.0.s8 %v1219
        %v1221 = vperm.slane %v1213, %v1220
        %v1222 = vrot.slane %v1205, 4
        %v1223 = vsel %vm558, 0.0, %v1222
        %v1224 = vrot.slane %v1209, 4
        %v1225 = vsel %vm558, 0.0, %v1224
        %v1226 = vrot.slane %v1217, 4
        %v1227 = vsel %vm558, 0.0, %v1226
        %v1228 = vrot.slane %v1221, 4
        %v1229 = vsel %vm558, 0.0, %v1228
        %v1230 = vsel %vm558, %v1224, %v1205
        %v1232 = vunpack.c.l.s4 1983009808
        %v1233 = vunpack.c.0.s8 %v1232
        %v1234 = vperm.slane %v1230, %v1233
        %v1235 = vrot.slane %v1225, 4
        %v1236 = vsel %vm558, %v1235, %v1223
        %v1238 = vunpack.c.l.s4 1983009808
        %v1239 = vunpack.c.0.s8 %v1238
        %v1240 = vperm.slane %v1236, %v1239
        %v1241 = vsel %vm558, %v1228, %v1217
        %v1243 = vunpack.c.l.s4 1983009808
        %v1244 = vunpack.c.0.s8 %v1243
        %v1245 = vperm.slane %v1241, %v1244
        %v1246 = vrot.slane %v1229, 4
        %v1247 = vsel %vm558, %v1246, %v1227
        %v1249 = vunpack.c.l.s4 1983009808
        %v1250 = vunpack.c.0.s8 %v1249
        %v1251 = vperm.slane %v1247, %v1250
        %v1252 = vrot.slane %v1240, 4
        %v1253 = vsel %vm558, %v1252, %v1234
        %v1254 = vrot.slane %v1234, 4
        %v1255 = vsel %vm558, %v1240, %v1254
        %v1257 = vunpack.c.l.s4 1934713408
        %v1258 = vunpack.c.0.s8 %v1257
        %v1259 = vperm.slane %v1253, %v1258
        %v1261 = vunpack.c.l.s4 1934713408
        %v1262 = vunpack.c.0.s8 %v1261
        %v1263 = vperm.slane %v1255, %v1262
        %v1264 = vrot.slane %v1251, 4
        %v1265 = vsel %vm558, %v1264, %v1245
        %v1266 = vrot.slane %v1245, 4
        %v1267 = vsel %vm558, %v1251, %v1266
        %v1269 = vunpack.c.l.s4 1934713408
        %v1270 = vunpack.c.0.s8 %v1269
        %v1271 = vperm.slane %v1265, %v1270
        %v1273 = vunpack.c.l.s4 1934713408
        %v1274 = vunpack.c.0.s8 %v1273
        %v1275 = vperm.slane %v1267, %v1274
        %v1276 = vrot.slane %v1271, 4
        %v1277 = vsel %vm558, %v1276, %v1259
        %v1278 = vrot.slane %v1259, 4
        %v1279 = vsel %vm558, %v1271, %v1278
        %v1280 = vrot.slane %v1275, 4
        %v1281 = vsel %vm558, %v1280, %v1263
        %v1282 = vrot.slane %v1263, 4
        %v1283 = vsel %vm558, %v1275, %v1282
        %1285 = vrot.lane.b32.xlu0 %v1279, 8
        %v1286 = vpop.permute.xlu0 %1285
        %1289 = vrot.lane.b32.xlu0 %v1281, 16
        %v1290 = vpop.permute.xlu0 %1289
        %1293 = vrot.lane.b32.xlu0 %v1283, 24
        %v1294 = vpop.permute.xlu0 %1293
        %v1296 = vsel %vm916, %v1277, %v1286
        %vm1297 = vcmask 130048
        %v1298 = vsel %vm1297, %v1296, %v1290
        %vm1299 = vcmask 195584
        %v1300 = vsel %vm1299, %v1298, %v1294
        %v1301 = vpack.c.bf16 %v1300, %v1300
        %v1302 = vld [vmem:[#allocation13] sm:$0xff]
        %v1303 = vld [vmem:[#allocation13 + $0x8] sm:$0xff]
        %v1304 = vld [vmem:[#allocation13 + $0x10] sm:$0xff]
        %v1305 = vld [vmem:[#allocation13 + $0x18] sm:$0xff]
        %v1306 = vpack.c.bf16 %v1303, %v1302
        %v1307 = vpack.c.bf16 %v1305, %v1304
        %v1309 = vsel %vm467, %v1301, 0
        %v1312 = vsel %vm467, %v1306, 0
        %v1315 = vsel %vm467, %v1307, 0
        %1317 = vmatpush.bf16.xpose.msra.mxu0 0
        %1318 = vmatpush.bf16.xpose.msra.mxu0 0
        %1319 = vmatpush.bf16.xpose.msra.mxu0 0
        %1320 = vmatpush.bf16.xpose.msra.mxu0 0
        %1321 = vmatpush.bf16.xpose.msra.mxu0 0
        %1322 = vmatpush.bf16.xpose.msra.mxu0 0
        %1323 = vmatpush.bf16.xpose.msra.mxu0 %v1315
        %1324 = vmatpush.bf16.xpose.msra.mxu0 %v1312
        %1325 = vmatmul.bf16.gmra.mxu0 %v1309
        %v1326 = vpop.f32.mrf.mxu0
        %v1327 = vadd.f32 0.0, %v1326
        %v1328 = vpop.f32.mrf.mxu0
        %1329 = vdwg.mxu0
        %1330 = vst.msk [vmem:[%s453] sm:$0xff] %vm467, %v1327
        %s1331 = sand.u32 %s215, 1
        %s1332 = scalar_lea.sflag [#allocation4], %s1331
        %s1333 = sand.u32 %s215, 1
        %s1334 = smul.addr %s1333, 8
        %s1335 = scalar_lea.vmem [#allocation14], %s1334
        // Predicated region
        $region77: #{tpu_custom_call.1} parent=47 // pred_check
          %p1336 = pneg %p225
        $region78: #{tpu_custom_call.1} parent=47 // pred_check_branch
          %1338 = sbr.rel (%p1336) target = $region80
        $region79: #{tpu_custom_call.1} parent=47 // pred_region
          %1340 = vsyncadd %s1332, 0
          %s1341 = sadd.s32 %s34, %s33
          %s1342 = smul.addr %s1341, 8
          %s1343 = scalar_lea.hbm %s7, %s1342
          %s1345 = sshll.u32 %s1335, 4
          %s1346 = int_to_ptr.vmem [resolvable:$true] %s1345
          %s1347 = sshll.u32 %s1343, 4
          %s1348 = int_to_ptr.hbm [resolvable:$true] %s1347
          %1350 = dma.vmem_to_hbm [thread:$0]  %s1346, 128, %s1348, %s1332
        $region80: #{tpu_custom_call.1} parent=47 // pred_fallthru
          _
      $region48: #{tpu_custom_call.1} parent=5 // pred_fallthru
        _
      %p1351 = scmp.le.s32.totalorder 2, %s24
      // Predicated region
      $region81: #{tpu_custom_call.1} parent=5 // pred_check
        %p1352 = pneg %p1351
      $region82: #{tpu_custom_call.1} parent=5 // pred_check_branch
        %1354 = sbr.rel (%p1352) target = $region84
      $region83: #{tpu_custom_call.1} parent=5 // pred_region
        %s1355 = ssub.s32 %s24, 2
        // Predicated region
        $region85: #{tpu_custom_call.1} parent=83 // pred_check
          %p1356 = pneg %p231
        $region86: #{tpu_custom_call.1} parent=83 // pred_check_branch
          %1358 = sbr.rel (%p1356) target = $region88
        $region87: #{tpu_custom_call.1} parent=83 // pred_region
          %s1359 = sand.u32 %s216, 1
          %s1360 = scalar_lea.sflag [#allocation4], %s1359
          %s1361 = sand.u32 %s216, 1
          %s1362 = smul.addr %s1361, 8
          %s1363 = scalar_lea.vmem [#allocation14], %s1362
          %1365 = dma.done %s1360, 128
        $region88: #{tpu_custom_call.1} parent=83 // pred_fallthru
          _
      $region84: #{tpu_custom_call.1} parent=5 // pred_fallthru
        _
    $region6: #{tpu_custom_call.1} parent=1 // loop_footer
      %s28 = sadd.s32 1, %s24
    $region7: #{tpu_custom_call.1} parent=1 // loop_footer_branch
      %23 = sbr.rel target = $region3
    $region8: #{tpu_custom_call.1} parent=1 // loop_exit
      _
    %1366 = vsyncpa [#allocation3], 1
    %s1367 = scalar_lea.sflag [#allocation3], 1
    %1368 = vsyncpa %s1367, 1
    %1369 = vsyncpa [#allocation6], 1
    %s1370 = scalar_lea.sflag [#allocation6], 1
    %1371 = vsyncpa %s1370, 1
    %1372 = vsyncpa [#allocation9], 1
    %1373 = vsyncpa [#allocation12], 1
    %1374 = vsyncpa [#allocation4], 1
    %s1375 = scalar_lea.sflag [#allocation4], 1
    %1376 = vsyncpa %s1375, 1

</llo_original>
